<compile_context>
chip_gen: v5e
topology: v5e:2x2
jax: 0.10.0
libtpu: 0.0.40
codegen_flags: <defaults>
</compile_context>

<pallas_src>
import math

import jax
import jax.numpy as jnp
import numpy as np
from jax.experimental import pallas as pl
from jax.experimental.pallas import tpu as pltpu

# ---- problem sizes (small, consistent with the module) -----------------------
B = 2                      # batch
LS = 8                     # sequence length
D_MODEL = 32               # d_model
N_HEADS = 8                # fixed by MultiHeadAttn default
D_K = D_MODEL // N_HEADS   # = d_v = 4
D_FF = 64
HK = N_HEADS * LS          # 64: stacked (head, key) lane axis for the scores
LN_EPS = 1e-5
NEG_BIG = -1e30            # additive mask bias (finite -> no NaN hazard)

# 128-lane-aligned column offsets inside the packed weight slab [D_FF, 768]
_C_QKV = 0        # cols [  0: 96), rows 0:32 : [WQ^T/sqrt(dk) | WK^T | WV^T]
_C_O = 128        # cols [128:160), rows 0:32 : WO^T
_C_F1 = 256       # cols [256:320), rows 0:32 : W1^T
_C_F2 = 384       # cols [384:416), rows 0:64 : W2^T
_C_SEL = 512      # cols [512:544), rows 0:64 : head selector sel[h*Ls+k, d] = (d//dk == h)
_C_SUM = 640      # cols [640:704), rows 0:64 : block-sum     ssum[j, c]    = (j//Ls == c//Ls)
_W_COLS = 768

# row indices inside the packed vector slab [6, D_FF]
_R_B1, _R_B2, _R_G1, _R_BE1, _R_G2, _R_BE2 = range(6)


def _layernorm(x, gamma, beta):
    # x: [rows, Dm]; gamma/beta: [1, Dm]
    mu = jnp.mean(x, axis=-1, keepdims=True)
    xc = x - mu
    var = jnp.mean(xc * xc, axis=-1, keepdims=True)
    return xc * jax.lax.rsqrt(var + LN_EPS) * gamma + beta


def encoder_block_kernel(x_ref, bias_ref, wm_ref, vec_ref, out_ref):
    """Single invocation: everything VMEM-resident, batch flattened to rows."""
    x = x_ref[...]                         # [B*Ls, Dm]
    bias = bias_ref[...]                   # [B*Ls, H*Ls] additive mask bias

    # 128-lane-aligned static slices of the packed weight slab (plain loads).
    w_qkv = wm_ref[0:D_MODEL, _C_QKV:_C_QKV + 3 * D_MODEL]    # [Dm, 3*Dm]
    w_o = wm_ref[0:D_MODEL, _C_O:_C_O + D_MODEL]              # [Dm, Dm]
    w_f1 = wm_ref[0:D_MODEL, _C_F1:_C_F1 + D_FF]              # [Dm, Dff]
    w_f2 = wm_ref[0:D_FF, _C_F2:_C_F2 + D_MODEL]              # [Dff, Dm]
    sel = wm_ref[0:HK, _C_SEL:_C_SEL + D_MODEL]               # [HK, Dm] 0/1
    ssum = wm_ref[0:HK, _C_SUM:_C_SUM + HK]                   # [HK, HK] 0/1

    b1 = vec_ref[_R_B1:_R_B1 + 1, :]                          # [1, Dff]
    b2 = vec_ref[_R_B2:_R_B2 + 1, 0:D_MODEL]
    g1 = vec_ref[_R_G1:_R_G1 + 1, 0:D_MODEL]
    be1 = vec_ref[_R_BE1:_R_BE1 + 1, 0:D_MODEL]
    g2 = vec_ref[_R_G2:_R_G2 + 1, 0:D_MODEL]
    be2 = vec_ref[_R_BE2:_R_BE2 + 1, 0:D_MODEL]

    # --- fused Q/K/V projection (1/sqrt(d_k) pre-folded into WQ^T) ------------
    qkv = jnp.dot(x, w_qkv, preferred_element_type=jnp.float32)       # [16, 96]
    q = qkv[:, 0:D_MODEL]
    k = qkv[:, D_MODEL:2 * D_MODEL]
    v = qkv[:, 2 * D_MODEL:3 * D_MODEL]

    # --- per-batch block-diagonal attention: lane-dense [Ls, HK] scores -------
    s_parts, vblks = [], []
    for b in range(B):                                        # static, B = 2
        rows = slice(b * LS, (b + 1) * LS)
        qb, kb, vb = q[rows, :], k[rows, :], v[rows, :]
        # rows j = h*Ls + key of the block matrices carry K/V masked to head h
        krows = jnp.concatenate([kb] * N_HEADS, axis=0) * sel          # [HK, Dm]
        vblk = jnp.concatenate([vb] * N_HEADS, axis=0) * sel           # [HK, Dm]
        s_b = jax.lax.dot_general(qb, krows, (((1,), (1,)), ((), ())),
                                  preferred_element_type=jnp.float32)  # [Ls, HK]
        s_parts.append(s_b)
        vblks.append(vblk)
    s = jnp.concatenate(s_parts, axis=0) + bias                        # [16, 64]

    # --- softmax in the lane-dense layout --------------------------------------
    s_max = jnp.max(s, axis=-1, keepdims=True)   # row-wide max: shift-invariant per 8-lane segment
    e = jnp.exp(s - s_max)
    denom = jnp.dot(e, ssum, preferred_element_type=jnp.float32)       # segment sums, pre-broadcast
    r = pl.reciprocal(denom, approx=True)                              # EUP approx reciprocal
    r = r * (2.0 - denom * r)                                          # one Newton step -> ~f32 exact
    w = e * r                                                          # [16, 64]

    # --- attention apply: heads come out already concatenated along lanes ------
    hc = jnp.concatenate(
        [jnp.dot(w[b * LS:(b + 1) * LS, :], vblks[b],
                 preferred_element_type=jnp.float32) for b in range(B)], axis=0)   # [16, Dm]
    z1 = jnp.dot(hc, w_o, preferred_element_type=jnp.float32)          # [16, Dm]

    # dropout1 -> identity (eval); residual + layernorm1
    a1 = _layernorm(z1 + x, g1, be1)

    # --- feed-forward: Linear -> ReLU -> Linear --------------------------------
    h1 = jnp.maximum(
        jnp.dot(a1, w_f1, preferred_element_type=jnp.float32) + b1, 0.0)           # [16, Dff]
    z2 = jnp.dot(h1, w_f2, preferred_element_type=jnp.float32) + b2                # [16, Dm]

    # dropout2 -> identity (eval); residual + layernorm2
    out_ref[...] = _layernorm(z2 + a1, g2, be2)


def pack_params(params):
    """Pack the 12 parameters + the constant 0/1 matrices into two f32 slabs."""
    (wq_t, wk_t, wv_t, wo_t, w1_t, b1, w2_t, b2, g1, be1, g2, be2) = params
    w_slab = np.zeros((D_FF, _W_COLS), np.float32)
    w_slab[0:D_MODEL, _C_QKV:_C_QKV + 3 * D_MODEL] = np.concatenate(
        [np.asarray(wq_t) * np.float32(1.0 / math.sqrt(D_K)),
         np.asarray(wk_t), np.asarray(wv_t)], axis=1)
    w_slab[0:D_MODEL, _C_O:_C_O + D_MODEL] = np.asarray(wo_t)
    w_slab[0:D_MODEL, _C_F1:_C_F1 + D_FF] = np.asarray(w1_t)
    w_slab[0:D_FF, _C_F2:_C_F2 + D_MODEL] = np.asarray(w2_t)
    # 0/1 head selector and per-head block-sum matrices (compile-time constants)
    w_slab[0:HK, _C_SEL:_C_SEL + D_MODEL] = (
        np.arange(HK)[:, None] // LS == np.arange(D_MODEL)[None, :] // D_K
    ).astype(np.float32)
    w_slab[0:HK, _C_SUM:_C_SUM + HK] = (
        np.arange(HK)[:, None] // LS == np.arange(HK)[None, :] // LS
    ).astype(np.float32)

    v_slab = np.zeros((6, D_FF), np.float32)
    v_slab[_R_B1, 0:D_FF] = np.asarray(b1)[0]
    v_slab[_R_B2, 0:D_MODEL] = np.asarray(b2)[0]
    v_slab[_R_G1, 0:D_MODEL] = np.asarray(g1)[0]
    v_slab[_R_BE1, 0:D_MODEL] = np.asarray(be1)[0]
    v_slab[_R_G2, 0:D_MODEL] = np.asarray(g2)[0]
    v_slab[_R_BE2, 0:D_MODEL] = np.asarray(be2)[0]
    return jnp.asarray(w_slab), jnp.asarray(v_slab)       # [64,768], [6,64]


def encoder_block_pallas(x, mask, w_slab, v_slab):
    """x: [B, Ls, Dm] f32, mask: [B, Ls, Ls] int32 (1 = masked, 0 = keep)."""
    # Fold the mask into an additive f32 bias, pre-tiled to the [B*Ls, H*Ls]
    # (h*Ls + k) lane layout used by the in-kernel scores.
    bias = jnp.where(mask != 0, jnp.float32(NEG_BIG), jnp.float32(0.0))
    bias = jnp.tile(bias, (1, 1, N_HEADS)).reshape(B * LS, HK)

    vmem = pl.BlockSpec(memory_space=pltpu.MemorySpace.VMEM)   # whole array in VMEM, no grid
    out = pl.pallas_call(
        encoder_block_kernel,
        out_shape=jax.ShapeDtypeStruct((B * LS, D_MODEL), jnp.float32),
        in_specs=[vmem, vmem, vmem, vmem],
        out_specs=vmem,
    )(x.reshape(B * LS, D_MODEL), bias, w_slab, v_slab)
    return out.reshape(B, LS, D_MODEL)


# ----------------------------- pure-JAX reference ----------------------------
def encoder_block_ref(x, mask, params):
    (wq_t, wk_t, wv_t, wo_t, w1_t, b1, w2_t, b2, g1, be1, g2, be2) = params

    def ln(v, g, bt):
        mu = jnp.mean(v, axis=-1, keepdims=True)
        vc = v - mu
        var = jnp.mean(vc * vc, axis=-1, keepdims=True)
        return vc / jnp.sqrt(var + LN_EPS) * g + bt

    q_all = jnp.einsum('bld,dk->blk', x, wq_t)
    k_all = jnp.einsum('bld,dk->blk', x, wk_t)
    v_all = jnp.einsum('bld,dk->blk', x, wv_t)
    heads = []
    for h in range(N_HEADS):
        q = q_all[..., h * D_K:(h + 1) * D_K]
        k = k_all[..., h * D_K:(h + 1) * D_K]
        v = v_all[..., h * D_K:(h + 1) * D_K]
        s = jnp.einsum('bqd,bvd->bqv', q, k)
        s = jnp.where(mask != 0, -jnp.inf, s) / math.sqrt(D_K)
        w = jax.nn.softmax(s, axis=-1)
        heads.append(jnp.einsum('bqv,bvd->bqd', w, v))
    z1 = jnp.einsum('blk,kd->bld', jnp.concatenate(heads, axis=-1), wo_t)
    a1 = ln(z1 + x, g1, be1)
    h1 = jax.nn.relu(jnp.einsum('bld,df->blf', a1, w1_t) + b1)
    z2 = jnp.einsum('blf,fd->bld', h1, w2_t) + b2
    return ln(z2 + a1, g2, be2)


if __name__ == "__main__":
    key = jax.random.PRNGKey(0)
    ks = jax.random.split(key, 12)

    # deterministic parameter init (PyTorch shapes, stored transposed [in, out])
    scale = 0.1
    wq_t = (jax.random.normal(ks[0], (D_MODEL, N_HEADS * D_K)) * scale).astype(jnp.float32)
    wk_t = (jax.random.normal(ks[1], (D_MODEL, N_HEADS * D_K)) * scale).astype(jnp.float32)
    wv_t = (jax.random.normal(ks[2], (D_MODEL, N_HEADS * D_K)) * scale).astype(jnp.float32)
    wo_t = (jax.random.normal(ks[3], (N_HEADS * D_K, D_MODEL)) * scale).astype(jnp.float32)
    w1_t = (jax.random.normal(ks[4], (D_MODEL, D_FF)) * scale).astype(jnp.float32)
    b1 = (jax.random.normal(ks[5], (1, D_FF)) * scale).astype(jnp.float32)
    w2_t = (jax.random.normal(ks[6], (D_FF, D_MODEL)) * scale).astype(jnp.float32)
    b2 = (jax.random.normal(ks[7], (1, D_MODEL)) * scale).astype(jnp.float32)
    g1 = (1.0 + jax.random.normal(ks[8], (1, D_MODEL)) * 0.05).astype(jnp.float32)
    be1 = (jax.random.normal(ks[9], (1, D_MODEL)) * 0.05).astype(jnp.float32)
    g2 = (1.0 + jax.random.normal(ks[10], (1, D_MODEL)) * 0.05).astype(jnp.float32)
    be2 = (jax.random.normal(ks[11], (1, D_MODEL)) * 0.05).astype(jnp.float32)
    params = (wq_t, wk_t, wv_t, wo_t, w1_t, b1, w2_t, b2, g1, be1, g2, be2)

    # inputs
    xk = jax.random.PRNGKey(1)
    x = jax.random.normal(xk, (B, LS, D_MODEL), dtype=jnp.float32)
    # causal-style mask (1 = masked); each query row keeps >= 1 key so the
    # reference softmax is well-defined (same behaviour as the PyTorch module).
    qi = jnp.arange(LS)[:, None]
    vi = jnp.arange(LS)[None, :]
    mask = jnp.broadcast_to((vi > qi).astype(jnp.int32), (B, LS, LS))

    # pack weights/biases/LN params (+ constant selector matrices) once
    w_slab, v_slab = pack_params(params)

    out = encoder_block_pallas(x, mask, w_slab, v_slab)
    out = jax.block_until_ready(out)

    ref = encoder_block_ref(x, mask, params)
    np.testing.assert_allclose(np.asarray(out), np.asarray(ref), rtol=1e-4, atol=1e-4)

    print("KERNEL_OK")
</pallas_src>

<mosaic_0001>
module attributes {stable_mosaic.version = 11 : i64} {
  func.func @encoder_block_kernel(%arg0: memref<16x32xf32, #tpu.memory_space<vmem>>, %arg1: memref<16x64xf32, #tpu.memory_space<vmem>>, %arg2: memref<64x768xf32, #tpu.memory_space<vmem>>, %arg3: memref<6x64xf32, #tpu.memory_space<vmem>>, %arg4: memref<16x32xf32, #tpu.memory_space<vmem>>) attributes {dimension_semantics = [], scalar_prefetch = 0 : i64, scratch_operands = 0 : i64, tpu.core_type = #tpu.core_type<tc>} {
    %c0 = arith.constant 0 : index
    %c0_0 = arith.constant 0 : index
    %0 = vector.load %arg0[%c0, %c0_0] : memref<16x32xf32, #tpu.memory_space<vmem>>, vector<16x32xf32>
    %c0_1 = arith.constant 0 : index
    %c0_2 = arith.constant 0 : index
    %1 = vector.load %arg1[%c0_1, %c0_2] : memref<16x64xf32, #tpu.memory_space<vmem>>, vector<16x64xf32>
    %c0_3 = arith.constant 0 : index
    %c0_4 = arith.constant 0 : index
    %2 = vector.load %arg2[%c0_3, %c0_4] : memref<64x768xf32, #tpu.memory_space<vmem>>, vector<32x96xf32>
    %c0_5 = arith.constant 0 : index
    %c128 = arith.constant 128 : index
    %3 = vector.load %arg2[%c0_5, %c128] : memref<64x768xf32, #tpu.memory_space<vmem>>, vector<32x32xf32>
    %c0_6 = arith.constant 0 : index
    %c256 = arith.constant 256 : index
    %4 = vector.load %arg2[%c0_6, %c256] : memref<64x768xf32, #tpu.memory_space<vmem>>, vector<32x64xf32>
    %c0_7 = arith.constant 0 : index
    %c384 = arith.constant 384 : index
    %5 = vector.load %arg2[%c0_7, %c384] : memref<64x768xf32, #tpu.memory_space<vmem>>, vector<64x32xf32>
    %c0_8 = arith.constant 0 : index
    %c512 = arith.constant 512 : index
    %6 = vector.load %arg2[%c0_8, %c512] : memref<64x768xf32, #tpu.memory_space<vmem>>, vector<64x32xf32>
    %c0_9 = arith.constant 0 : index
    %c640 = arith.constant 640 : index
    %7 = vector.load %arg2[%c0_9, %c640] : memref<64x768xf32, #tpu.memory_space<vmem>>, vector<64x64xf32>
    %c0_10 = arith.constant 0 : index
    %c0_11 = arith.constant 0 : index
    %8 = vector.load %arg3[%c0_10, %c0_11] : memref<6x64xf32, #tpu.memory_space<vmem>>, vector<1x64xf32>
    %c1 = arith.constant 1 : index
    %c0_12 = arith.constant 0 : index
    %9 = vector.load %arg3[%c1, %c0_12] : memref<6x64xf32, #tpu.memory_space<vmem>>, vector<1x32xf32>
    %c2 = arith.constant 2 : index
    %c0_13 = arith.constant 0 : index
    %10 = vector.load %arg3[%c2, %c0_13] : memref<6x64xf32, #tpu.memory_space<vmem>>, vector<1x32xf32>
    %c3 = arith.constant 3 : index
    %c0_14 = arith.constant 0 : index
    %11 = vector.load %arg3[%c3, %c0_14] : memref<6x64xf32, #tpu.memory_space<vmem>>, vector<1x32xf32>
    %c4 = arith.constant 4 : index
    %c0_15 = arith.constant 0 : index
    %12 = vector.load %arg3[%c4, %c0_15] : memref<6x64xf32, #tpu.memory_space<vmem>>, vector<1x32xf32>
    %c5 = arith.constant 5 : index
    %c0_16 = arith.constant 0 : index
    %13 = vector.load %arg3[%c5, %c0_16] : memref<6x64xf32, #tpu.memory_space<vmem>>, vector<1x32xf32>
    %cst = arith.constant dense<0.000000e+00> : vector<16x96xf32>
    %14 = tpu.matmul %0, %2, %cst {dimension_numbers = #tpu.dot_dimension_numbers<[1], [0], [0], [1], [0, 0, 1, 1], [], []>} : vector<16x32xf32>, vector<32x96xf32>, vector<16x96xf32> -> vector<16x96xf32>
    %15 = vector.extract_strided_slice %14 {offsets = [0, 0], sizes = [16, 32], strides = [1, 1]} : vector<16x96xf32> to vector<16x32xf32>
    %16 = vector.extract_strided_slice %14 {offsets = [0, 32], sizes = [16, 32], strides = [1, 1]} : vector<16x96xf32> to vector<16x32xf32>
    %17 = vector.extract_strided_slice %14 {offsets = [0, 64], sizes = [16, 32], strides = [1, 1]} : vector<16x96xf32> to vector<16x32xf32>
    %18 = vector.extract_strided_slice %15 {offsets = [0, 0], sizes = [8, 32], strides = [1, 1]} : vector<16x32xf32> to vector<8x32xf32>
    %19 = vector.extract_strided_slice %16 {offsets = [0, 0], sizes = [8, 32], strides = [1, 1]} : vector<16x32xf32> to vector<8x32xf32>
    %20 = vector.extract_strided_slice %17 {offsets = [0, 0], sizes = [8, 32], strides = [1, 1]} : vector<16x32xf32> to vector<8x32xf32>
    %21 = tpu.concatenate %19, %19, %19, %19, %19, %19, %19, %19 in 0 : vector<8x32xf32>, vector<8x32xf32>, vector<8x32xf32>, vector<8x32xf32>, vector<8x32xf32>, vector<8x32xf32>, vector<8x32xf32>, vector<8x32xf32> -> vector<64x32xf32>
    %22 = arith.mulf %21, %6 : vector<64x32xf32>
    %23 = tpu.concatenate %20, %20, %20, %20, %20, %20, %20, %20 in 0 : vector<8x32xf32>, vector<8x32xf32>, vector<8x32xf32>, vector<8x32xf32>, vector<8x32xf32>, vector<8x32xf32>, vector<8x32xf32>, vector<8x32xf32> -> vector<64x32xf32>
    %24 = arith.mulf %23, %6 : vector<64x32xf32>
    %cst_17 = arith.constant dense<0.000000e+00> : vector<8x64xf32>
    %25 = tpu.matmul %18, %22, %cst_17 {dimension_numbers = #tpu.dot_dimension_numbers<[1], [1], [0], [0], [0, 0, 1, 0], [], []>} : vector<8x32xf32>, vector<64x32xf32>, vector<8x64xf32> -> vector<8x64xf32>
    %26 = vector.extract_strided_slice %15 {offsets = [8, 0], sizes = [8, 32], strides = [1, 1]} : vector<16x32xf32> to vector<8x32xf32>
    %27 = vector.extract_strided_slice %16 {offsets = [8, 0], sizes = [8, 32], strides = [1, 1]} : vector<16x32xf32> to vector<8x32xf32>
    %28 = vector.extract_strided_slice %17 {offsets = [8, 0], sizes = [8, 32], strides = [1, 1]} : vector<16x32xf32> to vector<8x32xf32>
    %29 = tpu.concatenate %27, %27, %27, %27, %27, %27, %27, %27 in 0 : vector<8x32xf32>, vector<8x32xf32>, vector<8x32xf32>, vector<8x32xf32>, vector<8x32xf32>, vector<8x32xf32>, vector<8x32xf32>, vector<8x32xf32> -> vector<64x32xf32>
    %30 = arith.mulf %29, %6 : vector<64x32xf32>
    %31 = tpu.concatenate %28, %28, %28, %28, %28, %28, %28, %28 in 0 : vector<8x32xf32>, vector<8x32xf32>, vector<8x32xf32>, vector<8x32xf32>, vector<8x32xf32>, vector<8x32xf32>, vector<8x32xf32>, vector<8x32xf32> -> vector<64x32xf32>
    %32 = arith.mulf %31, %6 : vector<64x32xf32>
    %cst_18 = arith.constant dense<0.000000e+00> : vector<8x64xf32>
    %33 = tpu.matmul %26, %30, %cst_18 {dimension_numbers = #tpu.dot_dimension_numbers<[1], [1], [0], [0], [0, 0, 1, 0], [], []>} : vector<8x32xf32>, vector<64x32xf32>, vector<8x64xf32> -> vector<8x64xf32>
    %34 = tpu.concatenate %25, %33 in 0 : vector<8x64xf32>, vector<8x64xf32> -> vector<16x64xf32>
    %35 = arith.addf %34, %1 : vector<16x64xf32>
    %cst_19 = arith.constant dense<0xFF800000> : vector<16xf32>
    %36 = vector.multi_reduction <maximumf>, %35, %cst_19 [1] : vector<16x64xf32> to vector<16xf32>
    %37 = vector.shape_cast %36 : vector<16xf32> to vector<16x1xf32>
    %38 = vector.broadcast %37 : vector<16x1xf32> to vector<16x64xf32>
    %39 = arith.subf %35, %38 : vector<16x64xf32>
    %40 = math.exp %39 : vector<16x64xf32>
    %cst_20 = arith.constant dense<0.000000e+00> : vector<16x64xf32>
    %41 = tpu.matmul %40, %7, %cst_20 {dimension_numbers = #tpu.dot_dimension_numbers<[1], [0], [0], [1], [0, 0, 1, 1], [], []>} : vector<16x64xf32>, vector<64x64xf32>, vector<16x64xf32> -> vector<16x64xf32>
    %42 = tpu.reciprocal %41 {approx = true} : vector<16x64xf32> -> vector<16x64xf32>
    %43 = arith.mulf %41, %42 : vector<16x64xf32>
    %cst_21 = arith.constant 2.000000e+00 : f32
    %44 = vector.broadcast %cst_21 : f32 to vector<16x64xf32>
    %45 = arith.subf %44, %43 : vector<16x64xf32>
    %46 = arith.mulf %42, %45 : vector<16x64xf32>
    %47 = arith.mulf %40, %46 : vector<16x64xf32>
    %48 = vector.extract_strided_slice %47 {offsets = [0, 0], sizes = [8, 64], strides = [1, 1]} : vector<16x64xf32> to vector<8x64xf32>
    %cst_22 = arith.constant dense<0.000000e+00> : vector<8x32xf32>
    %49 = tpu.matmul %48, %24, %cst_22 {dimension_numbers = #tpu.dot_dimension_numbers<[1], [0], [0], [1], [0, 0, 1, 1], [], []>} : vector<8x64xf32>, vector<64x32xf32>, vector<8x32xf32> -> vector<8x32xf32>
    %50 = vector.extract_strided_slice %47 {offsets = [8, 0], sizes = [8, 64], strides = [1, 1]} : vector<16x64xf32> to vector<8x64xf32>
    %cst_23 = arith.constant dense<0.000000e+00> : vector<8x32xf32>
    %51 = tpu.matmul %50, %32, %cst_23 {dimension_numbers = #tpu.dot_dimension_numbers<[1], [0], [0], [1], [0, 0, 1, 1], [], []>} : vector<8x64xf32>, vector<64x32xf32>, vector<8x32xf32> -> vector<8x32xf32>
    %52 = tpu.concatenate %49, %51 in 0 : vector<8x32xf32>, vector<8x32xf32> -> vector<16x32xf32>
    %cst_24 = arith.constant dense<0.000000e+00> : vector<16x32xf32>
    %53 = tpu.matmul %52, %3, %cst_24 {dimension_numbers = #tpu.dot_dimension_numbers<[1], [0], [0], [1], [0, 0, 1, 1], [], []>} : vector<16x32xf32>, vector<32x32xf32>, vector<16x32xf32> -> vector<16x32xf32>
    %54 = arith.addf %53, %0 : vector<16x32xf32>
    %cst_25 = arith.constant dense<0.000000e+00> : vector<16xf32>
    %55 = vector.multi_reduction <add>, %54, %cst_25 [1] : vector<16x32xf32> to vector<16xf32>
    %56 = vector.shape_cast %55 : vector<16xf32> to vector<16x1xf32>
    %cst_26 = arith.constant 3.200000e+01 : f32
    %57 = vector.broadcast %cst_26 : f32 to vector<16x1xf32>
    %58 = arith.divf %56, %57 : vector<16x1xf32>
    %59 = vector.broadcast %58 : vector<16x1xf32> to vector<16x32xf32>
    %60 = arith.subf %54, %59 : vector<16x32xf32>
    %61 = arith.mulf %60, %60 : vector<16x32xf32>
    %cst_27 = arith.constant dense<0.000000e+00> : vector<16xf32>
    %62 = vector.multi_reduction <add>, %61, %cst_27 [1] : vector<16x32xf32> to vector<16xf32>
    %63 = vector.shape_cast %62 : vector<16xf32> to vector<16x1xf32>
    %cst_28 = arith.constant 3.200000e+01 : f32
    %64 = vector.broadcast %cst_28 : f32 to vector<16x1xf32>
    %65 = arith.divf %63, %64 : vector<16x1xf32>
    %cst_29 = arith.constant 9.99999974E-6 : f32
    %66 = vector.broadcast %cst_29 : f32 to vector<16x1xf32>
    %67 = arith.addf %65, %66 : vector<16x1xf32>
    %68 = math.rsqrt %67 : vector<16x1xf32>
    %69 = vector.broadcast %68 : vector<16x1xf32> to vector<16x32xf32>
    %70 = arith.mulf %60, %69 : vector<16x32xf32>
    %71 = vector.broadcast %10 : vector<1x32xf32> to vector<16x32xf32>
    %72 = arith.mulf %70, %71 : vector<16x32xf32>
    %73 = vector.broadcast %11 : vector<1x32xf32> to vector<16x32xf32>
    %74 = arith.addf %72, %73 : vector<16x32xf32>
    %cst_30 = arith.constant dense<0.000000e+00> : vector<16x64xf32>
    %75 = tpu.matmul %74, %4, %cst_30 {dimension_numbers = #tpu.dot_dimension_numbers<[1], [0], [0], [1], [0, 0, 1, 1], [], []>} : vector<16x32xf32>, vector<32x64xf32>, vector<16x64xf32> -> vector<16x64xf32>
    %76 = vector.broadcast %8 : vector<1x64xf32> to vector<16x64xf32>
    %77 = arith.addf %75, %76 : vector<16x64xf32>
    %cst_31 = arith.constant 0.000000e+00 : f32
    %78 = vector.broadcast %cst_31 : f32 to vector<16x64xf32>
    %79 = arith.maximumf %77, %78 : vector<16x64xf32>
    %cst_32 = arith.constant dense<0.000000e+00> : vector<16x32xf32>
    %80 = tpu.matmul %79, %5, %cst_32 {dimension_numbers = #tpu.dot_dimension_numbers<[1], [0], [0], [1], [0, 0, 1, 1], [], []>} : vector<16x64xf32>, vector<64x32xf32>, vector<16x32xf32> -> vector<16x32xf32>
    %81 = vector.broadcast %9 : vector<1x32xf32> to vector<16x32xf32>
    %82 = arith.addf %80, %81 : vector<16x32xf32>
    %83 = arith.addf %82, %74 : vector<16x32xf32>
    %cst_33 = arith.constant dense<0.000000e+00> : vector<16xf32>
    %84 = vector.multi_reduction <add>, %83, %cst_33 [1] : vector<16x32xf32> to vector<16xf32>
    %85 = vector.shape_cast %84 : vector<16xf32> to vector<16x1xf32>
    %cst_34 = arith.constant 3.200000e+01 : f32
    %86 = vector.broadcast %cst_34 : f32 to vector<16x1xf32>
    %87 = arith.divf %85, %86 : vector<16x1xf32>
    %88 = vector.broadcast %87 : vector<16x1xf32> to vector<16x32xf32>
    %89 = arith.subf %83, %88 : vector<16x32xf32>
    %90 = arith.mulf %89, %89 : vector<16x32xf32>
    %cst_35 = arith.constant dense<0.000000e+00> : vector<16xf32>
    %91 = vector.multi_reduction <add>, %90, %cst_35 [1] : vector<16x32xf32> to vector<16xf32>
    %92 = vector.shape_cast %91 : vector<16xf32> to vector<16x1xf32>
    %cst_36 = arith.constant 3.200000e+01 : f32
    %93 = vector.broadcast %cst_36 : f32 to vector<16x1xf32>
    %94 = arith.divf %92, %93 : vector<16x1xf32>
    %cst_37 = arith.constant 9.99999974E-6 : f32
    %95 = vector.broadcast %cst_37 : f32 to vector<16x1xf32>
    %96 = arith.addf %94, %95 : vector<16x1xf32>
    %97 = math.rsqrt %96 : vector<16x1xf32>
    %98 = vector.broadcast %97 : vector<16x1xf32> to vector<16x32xf32>
    %99 = arith.mulf %89, %98 : vector<16x32xf32>
    %100 = vector.broadcast %12 : vector<1x32xf32> to vector<16x32xf32>
    %101 = arith.mulf %99, %100 : vector<16x32xf32>
    %102 = vector.broadcast %13 : vector<1x32xf32> to vector<16x32xf32>
    %103 = arith.addf %101, %102 : vector<16x32xf32>
    %c0_38 = arith.constant 0 : index
    %c0_39 = arith.constant 0 : index
    %104 = vector.load %arg4[%c0_38, %c0_39] : memref<16x32xf32, #tpu.memory_space<vmem>>, vector<16x32xf32>
    tpu.vector_store %arg4[%c0_38, %c0_39], %103 {strides = array<i32>} : memref<16x32xf32, #tpu.memory_space<vmem>>, vector<16x32xf32>,
    return
  }
}

</mosaic_0001>

<llo_original>
// kernel: tpu_custom_call.1
$region0: #{tpu_custom_call.1}
  #allocation0 [shape = 'u32[]', space=smem, size = 0x4, offset = 0x4, fixed_abs, tag = 'smem constant byte address 0x4 - core index']
  #allocation1 [shape = 'u32[72,128]{1,0:T(1,128)}', space=vmem, size = 0x9000, scoped, tag = 'internal scratch']
  %s0 = inlined_call_operand.hbm [shape: f32[16,32], index: 0, kind: input, shape index: {}]
  %s1 = inlined_call_operand.hbm [shape: f32[16,64], index: 1, kind: input, shape index: {}]
  %s2 = inlined_call_operand.hbm [shape: f32[64,768], index: 2, kind: input, shape index: {}]
  %s3 = inlined_call_operand.hbm [shape: f32[6,64], index: 3, kind: input, shape index: {}]
  %s4 = inlined_call_operand.hbm [shape: f32[16,32], index: 4, kind: output, shape index: {}]
  %s5 = sld [smem:[#allocation0]]
  $region42: #{tpu_custom_call.1} parent=0
    _
  %s7 = ssub.s32 1, %s5
  %s8 = scalar_select 0, %s7, %s5
  $region1: #{tpu_custom_call.1} parent=0
    #allocation2 [shape = 'u8[8192]{0}', space=vmem, size = 0x2000, scoped, tag = 'input window, operand 0, single buffered']
    #allocation3 [shape = 's32[1]{0}', space=sflag, size = 0x4, scoped, tag = 'scoped memory for tpu_custom_call.1']
    #allocation4 [shape = 's32[1]{0}', space=sflag, size = 0x4, scoped, tag = 'scoped memory for tpu_custom_call.1']
    #allocation5 [shape = 'u8[8192]{0}', space=vmem, size = 0x2000, scoped, tag = 'input window, operand 1, single buffered']
    #allocation6 [shape = 's32[1]{0}', space=sflag, size = 0x4, scoped, tag = 'scoped memory for tpu_custom_call.1']
    #allocation7 [shape = 'u8[196608]{0}', space=vmem, size = 0x30000, scoped, tag = 'input window, operand 2, single buffered']
    #allocation8 [shape = 'u8[4096]{0}', space=vmem, size = 0x1000, scoped, tag = 'input window, operand 3, single buffered']
    #allocation9 [shape = 's32[1]{0}', space=sflag, size = 0x4, scoped, tag = 'scoped memory for tpu_custom_call.1']
    #allocation10 [shape = 'u8[8192]{0}', space=vmem, size = 0x2000, scoped, tag = 'output window, operand 0, single buffered']
    %9 = vsyncpa [#allocation3], 0
    %10 = vsyncpa [#allocation6], 0
    %11 = vsyncpa [#allocation9], 0
    %12 = vsyncpa [#allocation4], 0
    // Predicated region
    $region2: #{tpu_custom_call.1} parent=1 // pred_check
      _
    $region3: #{tpu_custom_call.1} parent=1 // pred_check_branch
      %14 = sbr.rel (0) target = $region5
    $region4: #{tpu_custom_call.1} parent=1 // pred_region
      %16 = vsyncadd [#allocation3], 0
      %s17 = sshll.u32 %s0, 4
      %s18 = int_to_ptr.hbm [resolvable:$true] %s17
      %s19 = sshll.u32 [#allocation2], 4
      %s20 = int_to_ptr.vmem [resolvable:$true] %s19
      %25 = dma.hbm_to_vmem [thread:$0]  %s18, 256, %s20, [#allocation3], 128, 128, 8
    $region5: #{tpu_custom_call.1} parent=1 // pred_fallthru
      _
    // Predicated region
    $region6: #{tpu_custom_call.1} parent=1 // pred_check
      _
    $region7: #{tpu_custom_call.1} parent=1 // pred_check_branch
      %27 = sbr.rel (0) target = $region9
    $region8: #{tpu_custom_call.1} parent=1 // pred_region
      %29 = vsyncadd [#allocation6], 0
      %s30 = sshll.u32 %s1, 4
      %s31 = int_to_ptr.hbm [resolvable:$true] %s30
      %s32 = sshll.u32 [#allocation5], 4
      %s33 = int_to_ptr.vmem [resolvable:$true] %s32
      %38 = dma.hbm_to_vmem [thread:$0]  %s31, 256, %s33, [#allocation6], 128, 128, 8
    $region9: #{tpu_custom_call.1} parent=1 // pred_fallthru
      _
    // Predicated region
    $region10: #{tpu_custom_call.1} parent=1 // pred_check
      _
    $region11: #{tpu_custom_call.1} parent=1 // pred_check_branch
      %40 = sbr.rel (0) target = $region13
    $region12: #{tpu_custom_call.1} parent=1 // pred_region
      %42 = vsyncadd [#allocation6], 0
      %s43 = sshll.u32 %s2, 4
      %s44 = int_to_ptr.hbm [resolvable:$true] %s43
      %s45 = sshll.u32 [#allocation7], 4
      %s46 = int_to_ptr.vmem [resolvable:$true] %s45
      %51 = dma.hbm_to_vmem [thread:$0]  %s44, 6144, %s46, [#allocation6], 768, 768, 48
    $region13: #{tpu_custom_call.1} parent=1 // pred_fallthru
      _
    // Predicated region
    $region14: #{tpu_custom_call.1} parent=1 // pred_check
      _
    $region15: #{tpu_custom_call.1} parent=1 // pred_check_branch
      %53 = sbr.rel (0) target = $region17
    $region16: #{tpu_custom_call.1} parent=1 // pred_region
      %55 = vsyncadd [#allocation9], 0
      %s57 = sshll.u32 %s3, 4
      %s58 = int_to_ptr.hbm [resolvable:$true] %s57
      %s59 = sshll.u32 [#allocation8], 4
      %s60 = int_to_ptr.vmem [resolvable:$true] %s59
      %62 = dma.hbm_to_vmem [thread:$0]  %s58, 128, %s60, [#allocation9]
    $region17: #{tpu_custom_call.1} parent=1 // pred_fallthru
      _
    // Predicated region
    $region18: #{tpu_custom_call.1} parent=1 // pred_check
      _
    $region19: #{tpu_custom_call.1} parent=1 // pred_check_branch
      %64 = sbr.rel (0) target = $region21
    $region20: #{tpu_custom_call.1} parent=1 // pred_region
      %66 = dma.done [#allocation3], 256
    $region21: #{tpu_custom_call.1} parent=1 // pred_fallthru
      _
    // Predicated region
    $region22: #{tpu_custom_call.1} parent=1 // pred_check
      _
    $region23: #{tpu_custom_call.1} parent=1 // pred_check_branch
      %68 = sbr.rel (0) target = $region25
    $region24: #{tpu_custom_call.1} parent=1 // pred_region
      %70 = dma.done [#allocation6], 256
    $region25: #{tpu_custom_call.1} parent=1 // pred_fallthru
      _
    // Predicated region
    $region26: #{tpu_custom_call.1} parent=1 // pred_check
      _
    $region27: #{tpu_custom_call.1} parent=1 // pred_check_branch
      %72 = sbr.rel (0) target = $region29
    $region28: #{tpu_custom_call.1} parent=1 // pred_region
      %74 = dma.done [#allocation6], 6144
    $region29: #{tpu_custom_call.1} parent=1 // pred_fallthru
      _
    // Predicated region
    $region30: #{tpu_custom_call.1} parent=1 // pred_check
      _
    $region31: #{tpu_custom_call.1} parent=1 // pred_check_branch
      %76 = sbr.rel (0) target = $region33
    $region32: #{tpu_custom_call.1} parent=1 // pred_region
      %78 = dma.done [#allocation9], 128
    $region33: #{tpu_custom_call.1} parent=1 // pred_fallthru
      _
    %v79 = vld [vmem:[#allocation2] sm:$0xff]
    %v80 = vld [vmem:[#allocation2 + $0x8] sm:$0xff]
    %v81 = vld [vmem:[#allocation5] sm:$0xff]
    %v82 = vld [vmem:[#allocation5 + $0x8] sm:$0xff]
    %v83 = vld [vmem:[#allocation7] sm:$0xff]
    %v84 = vld [vmem:[#allocation7 + $0x30] sm:$0xff]
    %v85 = vld [vmem:[#allocation7 + $0x60] sm:$0xff]
    %v86 = vld [vmem:[#allocation7 + $0x90] sm:$0xff]
    %v87 = vld [vmem:[#allocation7 + $0x8] sm:$0xff]
    %v88 = vld [vmem:[#allocation7 + $0x38] sm:$0xff]
    %v89 = vld [vmem:[#allocation7 + $0x68] sm:$0xff]
    %v90 = vld [vmem:[#allocation7 + $0x98] sm:$0xff]
    %v91 = vld [vmem:[#allocation7 + $0x10] sm:$0xff]
    %v92 = vld [vmem:[#allocation7 + $0x40] sm:$0xff]
    %v93 = vld [vmem:[#allocation7 + $0x70] sm:$0xff]
    %v94 = vld [vmem:[#allocation7 + $0xa0] sm:$0xff]
    %v95 = vld [vmem:[#allocation7 + $0x18] sm:$0xff]
    %v96 = vld [vmem:[#allocation7 + $0x48] sm:$0xff]
    %v97 = vld [vmem:[#allocation7 + $0x78] sm:$0xff]
    %v98 = vld [vmem:[#allocation7 + $0xa8] sm:$0xff]
    %v99 = vld [vmem:[#allocation7 + $0xd8] sm:$0xff]
    %v100 = vld [vmem:[#allocation7 + $0x108] sm:$0xff]
    %v101 = vld [vmem:[#allocation7 + $0x138] sm:$0xff]
    %v102 = vld [vmem:[#allocation7 + $0x168] sm:$0xff]
    %v103 = vld [vmem:[#allocation7 + $0x20] sm:$0xff]
    %v104 = vld [vmem:[#allocation7 + $0x50] sm:$0xff]
    %v105 = vld [vmem:[#allocation7 + $0x80] sm:$0xff]
    %v106 = vld [vmem:[#allocation7 + $0xb0] sm:$0xff]
    %v107 = vld [vmem:[#allocation7 + $0xe0] sm:$0xff]
    %v108 = vld [vmem:[#allocation7 + $0x110] sm:$0xff]
    %v109 = vld [vmem:[#allocation7 + $0x140] sm:$0xff]
    %v110 = vld [vmem:[#allocation7 + $0x170] sm:$0xff]
    %v111 = vld [vmem:[#allocation7 + $0x28] sm:$0xff]
    %v112 = vld [vmem:[#allocation7 + $0x58] sm:$0xff]
    %v113 = vld [vmem:[#allocation7 + $0x88] sm:$0xff]
    %v114 = vld [vmem:[#allocation7 + $0xb8] sm:$0xff]
    %v115 = vld [vmem:[#allocation7 + $0xe8] sm:$0xff]
    %v116 = vld [vmem:[#allocation7 + $0x118] sm:$0xff]
    %v117 = vld [vmem:[#allocation7 + $0x148] sm:$0xff]
    %v118 = vld [vmem:[#allocation7 + $0x178] sm:$0xff]
    %v119 = vld [vmem:[#allocation8] sm:$0x1]
    %v120 = vld [vmem:[#allocation8 + $0x1] sm:$0x1]
    %v121 = vld [vmem:[#allocation8 + $0x2] sm:$0x1]
    %v122 = vld [vmem:[#allocation8 + $0x3] sm:$0x1]
    %v123 = vld [vmem:[#allocation8 + $0x4] sm:$0x1]
    %v124 = vld [vmem:[#allocation8 + $0x5] sm:$0x1]
    %vm125 = vcmask 261120
    %v127 = vsel %vm125, %v79, 0
    %v130 = vsel %vm125, %v80, 0
    %132 = vmatpush.msra.mxu0 0.0
    %133 = vmatpush.msra.mxu0 0.0
    %134 = vmatpush.msra.mxu0 0.0
    %135 = vmatpush.msra.mxu0 0.0
    %136 = vmatpush.msra.mxu0 0.0
    %137 = vmatpush.msra.mxu0 0.0
    %138 = vmatpush.msra.mxu0 0.0
    %139 = vmatpush.msra.mxu0 0.0
    %140 = vmatpush.msra.mxu0 0.0
    %141 = vmatpush.msra.mxu0 0.0
    %142 = vmatpush.msra.mxu0 0.0
    %143 = vmatpush.msra.mxu0 0.0
    %144 = vmatpush.msra.mxu0 %v86
    %145 = vmatpush.msra.mxu0 %v85
    %146 = vmatpush.msra.mxu0 %v84
    %147 = vmatpush.msra.mxu0 %v83
    %148 = vmatmul.f32.gmra.mxu0 %v127
    %v149 = vpop.f32.mrf.mxu0
    %v150 = vadd.f32 0.0, %v149
    %151 = vmatmul.f32.gmra.mxu0 %v130
    %v152 = vpop.f32.mrf.mxu0
    %v153 = vadd.f32 0.0, %v152
    %154 = vdwg.mxu0
    %163 = vrot.lane.b32.xlu0 %v103, 32
    %v164 = vpop.permute.xlu0 %163
    %165 = vrot.lane.b32.xlu0 %v104, 32
    %v166 = vpop.permute.xlu0 %165
    %167 = vrot.lane.b32.xlu0 %v105, 32
    %v168 = vpop.permute.xlu0 %167
    %169 = vrot.lane.b32.xlu0 %v106, 32
    %v170 = vpop.permute.xlu0 %169
    %171 = vrot.lane.b32.xlu0 %v107, 32
    %v172 = vpop.permute.xlu0 %171
    %173 = vrot.lane.b32.xlu0 %v108, 32
    %v174 = vpop.permute.xlu0 %173
    %175 = vrot.lane.b32.xlu0 %v109, 32
    %v176 = vpop.permute.xlu0 %175
    %177 = vrot.lane.b32.xlu0 %v110, 32
    %v178 = vpop.permute.xlu0 %177
    %v187 = vmul.f32 %v150, %v164
    %v188 = vmul.f32 %v150, %v166
    %v189 = vmul.f32 %v150, %v168
    %v190 = vmul.f32 %v150, %v170
    %v191 = vmul.f32 %v150, %v172
    %v192 = vmul.f32 %v150, %v174
    %v193 = vmul.f32 %v150, %v176
    %v194 = vmul.f32 %v150, %v178
    %195 = vrot.lane.b32.xlu0 %v103, 64
    %v196 = vpop.permute.xlu0 %195
    %197 = vrot.lane.b32.xlu0 %v104, 64
    %v198 = vpop.permute.xlu0 %197
    %199 = vrot.lane.b32.xlu0 %v105, 64
    %v200 = vpop.permute.xlu0 %199
    %201 = vrot.lane.b32.xlu0 %v106, 64
    %v202 = vpop.permute.xlu0 %201
    %203 = vrot.lane.b32.xlu0 %v107, 64
    %v204 = vpop.permute.xlu0 %203
    %205 = vrot.lane.b32.xlu0 %v108, 64
    %v206 = vpop.permute.xlu0 %205
    %207 = vrot.lane.b32.xlu0 %v109, 64
    %v208 = vpop.permute.xlu0 %207
    %209 = vrot.lane.b32.xlu0 %v110, 64
    %v210 = vpop.permute.xlu0 %209
    %v219 = vmul.f32 %v150, %v196
    %v220 = vmul.f32 %v150, %v198
    %v221 = vmul.f32 %v150, %v200
    %v222 = vmul.f32 %v150, %v202
    %v223 = vmul.f32 %v150, %v204
    %v224 = vmul.f32 %v150, %v206
    %v225 = vmul.f32 %v150, %v208
    %v226 = vmul.f32 %v150, %v210
    %235 = vrot.lane.b32.xlu0 %v187, 96
    %v236 = vpop.permute.xlu0 %235
    %237 = vrot.lane.b32.xlu0 %v188, 96
    %v238 = vpop.permute.xlu0 %237
    %239 = vrot.lane.b32.xlu0 %v189, 96
    %v240 = vpop.permute.xlu0 %239
    %241 = vrot.lane.b32.xlu0 %v190, 96
    %v242 = vpop.permute.xlu0 %241
    %243 = vrot.lane.b32.xlu0 %v191, 96
    %v244 = vpop.permute.xlu0 %243
    %245 = vrot.lane.b32.xlu0 %v192, 96
    %v246 = vpop.permute.xlu0 %245
    %247 = vrot.lane.b32.xlu0 %v193, 96
    %v248 = vpop.permute.xlu0 %247
    %249 = vrot.lane.b32.xlu0 %v194, 96
    %v250 = vpop.permute.xlu0 %249
    %v252 = vsel %vm125, %v150, 0
    %v254 = vsel %vm125, %v236, 0
    %v256 = vsel %vm125, %v238, 0
    %v258 = vsel %vm125, %v240, 0
    %v260 = vsel %vm125, %v242, 0
    %v262 = vsel %vm125, %v244, 0
    %v264 = vsel %vm125, %v246, 0
    %v266 = vsel %vm125, %v248, 0
    %v268 = vsel %vm125, %v250, 0
    %270 = vmatpush.xpose.msra.mxu0 0.0
    %271 = vmatpush.xpose.msra.mxu0 0.0
    %272 = vmatpush.xpose.msra.mxu0 0.0
    %273 = vmatpush.xpose.msra.mxu0 0.0
    %274 = vmatpush.xpose.msra.mxu0 0.0
    %275 = vmatpush.xpose.msra.mxu0 0.0
    %276 = vmatpush.xpose.msra.mxu0 0.0
    %277 = vmatpush.xpose.msra.mxu0 0.0
    %278 = vmatpush.xpose.msra.mxu0 %v268
    %279 = vmatpush.xpose.msra.mxu0 %v266
    %280 = vmatpush.xpose.msra.mxu0 %v264
    %281 = vmatpush.xpose.msra.mxu0 %v262
    %282 = vmatpush.xpose.msra.mxu0 %v260
    %283 = vmatpush.xpose.msra.mxu0 %v258
    %284 = vmatpush.xpose.msra.mxu0 %v256
    %285 = vmatpush.xpose.msra.mxu0 %v254
    %286 = vmatmul.f32.gmra.mxu0 %v252
    %v287 = vpop.f32.mrf.mxu0
    %v288 = vadd.f32 0.0, %v287
    %289 = vdwg.mxu0
    %v290 = vmul.f32 %v153, %v164
    %v291 = vmul.f32 %v153, %v166
    %v292 = vmul.f32 %v153, %v168
    %v293 = vmul.f32 %v153, %v170
    %v294 = vmul.f32 %v153, %v172
    %v295 = vmul.f32 %v153, %v174
    %v296 = vmul.f32 %v153, %v176
    %v297 = vmul.f32 %v153, %v178
    %v298 = vmul.f32 %v153, %v196
    %v299 = vmul.f32 %v153, %v198
    %v300 = vmul.f32 %v153, %v200
    %v301 = vmul.f32 %v153, %v202
    %v302 = vmul.f32 %v153, %v204
    %v303 = vmul.f32 %v153, %v206
    %v304 = vmul.f32 %v153, %v208
    %v305 = vmul.f32 %v153, %v210
    %314 = vrot.lane.b32.xlu0 %v290, 96
    %v315 = vpop.permute.xlu0 %314
    %316 = vrot.lane.b32.xlu0 %v291, 96
    %v317 = vpop.permute.xlu0 %316
    %318 = vrot.lane.b32.xlu0 %v292, 96
    %v319 = vpop.permute.xlu0 %318
    %320 = vrot.lane.b32.xlu0 %v293, 96
    %v321 = vpop.permute.xlu0 %320
    %322 = vrot.lane.b32.xlu0 %v294, 96
    %v323 = vpop.permute.xlu0 %322
    %324 = vrot.lane.b32.xlu0 %v295, 96
    %v325 = vpop.permute.xlu0 %324
    %326 = vrot.lane.b32.xlu0 %v296, 96
    %v327 = vpop.permute.xlu0 %326
    %328 = vrot.lane.b32.xlu0 %v297, 96
    %v329 = vpop.permute.xlu0 %328
    %v331 = vsel %vm125, %v153, 0
    %v333 = vsel %vm125, %v315, 0
    %v335 = vsel %vm125, %v317, 0
    %v337 = vsel %vm125, %v319, 0
    %v339 = vsel %vm125, %v321, 0
    %v341 = vsel %vm125, %v323, 0
    %v343 = vsel %vm125, %v325, 0
    %v345 = vsel %vm125, %v327, 0
    %v347 = vsel %vm125, %v329, 0
    %349 = vmatpush.xpose.msra.mxu0 0.0
    %350 = vmatpush.xpose.msra.mxu0 0.0
    %351 = vmatpush.xpose.msra.mxu0 0.0
    %352 = vmatpush.xpose.msra.mxu0 0.0
    %353 = vmatpush.xpose.msra.mxu0 0.0
    %354 = vmatpush.xpose.msra.mxu0 0.0
    %355 = vmatpush.xpose.msra.mxu0 0.0
    %356 = vmatpush.xpose.msra.mxu0 0.0
    %357 = vmatpush.xpose.msra.mxu0 %v347
    %358 = vmatpush.xpose.msra.mxu0 %v345
    %359 = vmatpush.xpose.msra.mxu0 %v343
    %360 = vmatpush.xpose.msra.mxu0 %v341
    %361 = vmatpush.xpose.msra.mxu0 %v339
    %362 = vmatpush.xpose.msra.mxu0 %v337
    %363 = vmatpush.xpose.msra.mxu0 %v335
    %364 = vmatpush.xpose.msra.mxu0 %v333
    %365 = vmatmul.f32.gmra.mxu0 %v331
    %v366 = vpop.f32.mrf.mxu0
    %v367 = vadd.f32 0.0, %v366
    %368 = vdwg.mxu0
    %v369 = vadd.f32 %v288, %v81
    %v370 = vadd.f32 %v367, %v82
    %vm371 = vcmask 523264
    %v372 = vsel %vm371, %v369, -inf
    %373 = vmax.xlane.f32.xlu0 %v372
    %v374 = vpop.xlane.xlu0 %373
    %v375 = vsel %vm371, %v370, -inf
    %376 = vmax.xlane.f32.xlu0 %v375
    %v377 = vpop.xlane.xlu0 %376
    %v378 = vsub.f32 %v369, %v374
    %v379 = vsub.f32 %v370, %v377
    %v380 = vmul.f32 %v378, 1.442695
    %v381 = vpow.pop %v380
    %v382 = vmul.f32 %v379, 1.442695
    %v383 = vpow.pop %v382
    %v385 = vsel %vm371, %v381, 0
    %v388 = vsel %vm371, %v383, 0
    %390 = vmatpush.msra.mxu0 0.0
    %391 = vmatpush.msra.mxu0 0.0
    %392 = vmatpush.msra.mxu0 0.0
    %393 = vmatpush.msra.mxu0 0.0
    %394 = vmatpush.msra.mxu0 0.0
    %395 = vmatpush.msra.mxu0 0.0
    %396 = vmatpush.msra.mxu0 0.0
    %397 = vmatpush.msra.mxu0 0.0
    %398 = vmatpush.msra.mxu0 %v118
    %399 = vmatpush.msra.mxu0 %v117
    %400 = vmatpush.msra.mxu0 %v116
    %401 = vmatpush.msra.mxu0 %v115
    %402 = vmatpush.msra.mxu0 %v114
    %403 = vmatpush.msra.mxu0 %v113
    %404 = vmatpush.msra.mxu0 %v112
    %405 = vmatpush.msra.mxu0 %v111
    %406 = vmatmul.f32.gmra.mxu0 %v385
    %v407 = vpop.f32.mrf.mxu0
    %v408 = vadd.f32 0.0, %v407
    %409 = vmatmul.f32.gmra.mxu0 %v388
    %v410 = vpop.f32.mrf.mxu0
    %v411 = vadd.f32 0.0, %v410
    %412 = vdwg.mxu0
    %v413 = vrcp.pop %v408
    %v414 = vrcp.pop %v411
    %v415 = vmul.f32 %v408, %v413
    %v416 = vmul.f32 %v411, %v414
    %v417 = vsub.f32 2.0, %v415
    %v418 = vsub.f32 2.0, %v416
    %v419 = vmul.f32 %v413, %v417
    %v420 = vmul.f32 %v414, %v418
    %v421 = vmul.f32 %v381, %v419
    %v422 = vmul.f32 %v383, %v420
    %431 = vrot.lane.b32.xlu0 %v219, 64
    %v432 = vpop.permute.xlu0 %431
    %433 = vrot.lane.b32.xlu0 %v220, 64
    %v434 = vpop.permute.xlu0 %433
    %435 = vrot.lane.b32.xlu0 %v221, 64
    %v436 = vpop.permute.xlu0 %435
    %437 = vrot.lane.b32.xlu0 %v222, 64
    %v438 = vpop.permute.xlu0 %437
    %439 = vrot.lane.b32.xlu0 %v223, 64
    %v440 = vpop.permute.xlu0 %439
    %441 = vrot.lane.b32.xlu0 %v224, 64
    %v442 = vpop.permute.xlu0 %441
    %443 = vrot.lane.b32.xlu0 %v225, 64
    %v444 = vpop.permute.xlu0 %443
    %445 = vrot.lane.b32.xlu0 %v226, 64
    %v446 = vpop.permute.xlu0 %445
    %v456 = vsel %vm371, %v421, 0
    %458 = vmatpush.msra.mxu0 0.0
    %459 = vmatpush.msra.mxu0 0.0
    %460 = vmatpush.msra.mxu0 0.0
    %461 = vmatpush.msra.mxu0 0.0
    %462 = vmatpush.msra.mxu0 0.0
    %463 = vmatpush.msra.mxu0 0.0
    %464 = vmatpush.msra.mxu0 0.0
    %465 = vmatpush.msra.mxu0 0.0
    %466 = vmatpush.msra.mxu0 %v446
    %467 = vmatpush.msra.mxu0 %v444
    %468 = vmatpush.msra.mxu0 %v442
    %469 = vmatpush.msra.mxu0 %v440
    %470 = vmatpush.msra.mxu0 %v438
    %471 = vmatpush.msra.mxu0 %v436
    %472 = vmatpush.msra.mxu0 %v434
    %473 = vmatpush.msra.mxu0 %v432
    %474 = vmatmul.f32.gmra.mxu0 %v456
    %v475 = vpop.f32.mrf.mxu0
    %v476 = vadd.f32 0.0, %v475
    %477 = vdwg.mxu0
    %486 = vrot.lane.b32.xlu0 %v298, 64
    %v487 = vpop.permute.xlu0 %486
    %488 = vrot.lane.b32.xlu0 %v299, 64
    %v489 = vpop.permute.xlu0 %488
    %490 = vrot.lane.b32.xlu0 %v300, 64
    %v491 = vpop.permute.xlu0 %490
    %492 = vrot.lane.b32.xlu0 %v301, 64
    %v493 = vpop.permute.xlu0 %492
    %494 = vrot.lane.b32.xlu0 %v302, 64
    %v495 = vpop.permute.xlu0 %494
    %496 = vrot.lane.b32.xlu0 %v303, 64
    %v497 = vpop.permute.xlu0 %496
    %498 = vrot.lane.b32.xlu0 %v304, 64
    %v499 = vpop.permute.xlu0 %498
    %500 = vrot.lane.b32.xlu0 %v305, 64
    %v501 = vpop.permute.xlu0 %500
    %v511 = vsel %vm371, %v422, 0
    %513 = vmatpush.msra.mxu0 0.0
    %514 = vmatpush.msra.mxu0 0.0
    %515 = vmatpush.msra.mxu0 0.0
    %516 = vmatpush.msra.mxu0 0.0
    %517 = vmatpush.msra.mxu0 0.0
    %518 = vmatpush.msra.mxu0 0.0
    %519 = vmatpush.msra.mxu0 0.0
    %520 = vmatpush.msra.mxu0 0.0
    %521 = vmatpush.msra.mxu0 %v501
    %522 = vmatpush.msra.mxu0 %v499
    %523 = vmatpush.msra.mxu0 %v497
    %524 = vmatpush.msra.mxu0 %v495
    %525 = vmatpush.msra.mxu0 %v493
    %526 = vmatpush.msra.mxu0 %v491
    %527 = vmatpush.msra.mxu0 %v489
    %528 = vmatpush.msra.mxu0 %v487
    %529 = vmatmul.f32.gmra.mxu0 %v511
    %v530 = vpop.f32.mrf.mxu0
    %v531 = vadd.f32 0.0, %v530
    %532 = vdwg.mxu0
    %v534 = vsel %vm125, %v476, 0
    %v537 = vsel %vm125, %v531, 0
    %539 = vmatpush.msra.mxu0 0.0
    %540 = vmatpush.msra.mxu0 0.0
    %541 = vmatpush.msra.mxu0 0.0
    %542 = vmatpush.msra.mxu0 0.0
    %543 = vmatpush.msra.mxu0 0.0
    %544 = vmatpush.msra.mxu0 0.0
    %545 = vmatpush.msra.mxu0 0.0
    %546 = vmatpush.msra.mxu0 0.0
    %547 = vmatpush.msra.mxu0 0.0
    %548 = vmatpush.msra.mxu0 0.0
    %549 = vmatpush.msra.mxu0 0.0
    %550 = vmatpush.msra.mxu0 0.0
    %551 = vmatpush.msra.mxu0 %v90
    %552 = vmatpush.msra.mxu0 %v89
    %553 = vmatpush.msra.mxu0 %v88
    %554 = vmatpush.msra.mxu0 %v87
    %555 = vmatmul.f32.gmra.mxu0 %v534
    %v556 = vpop.f32.mrf.mxu0
    %v557 = vadd.f32 %v79, %v556
    %558 = vmatmul.f32.gmra.mxu0 %v537
    %v559 = vpop.f32.mrf.mxu0
    %v560 = vadd.f32 %v80, %v559
    %561 = vdwg.mxu0
    %v562 = vsel %vm125, %v557, 0.0
    %563 = vadd.xlane.f32.xlu0 %v562
    %v564 = vpop.xlane.xlu0 %563
    %v565 = vsel %vm125, %v560, 0.0
    %566 = vadd.xlane.f32.xlu0 %v565
    %v567 = vpop.xlane.xlu0 %566
    %v568 = vrcp.pop 32.0
    %v569 = vmul.f32 32.0, %v568
    %v570 = vsub.f32 1.0, %v569
    %v571 = vmul.f32 %v568, %v570
    %v572 = vadd.f32 %v568, %v571
    %vm573 = vweird.f32 %v568
    %v574 = vsel %vm573, %v568, %v572
    %v575 = vmul.f32 %v564, %v574
    %v576 = vmul.f32 %v567, %v574
    %v577 = vsub.f32 %v557, %v575
    %v578 = vsub.f32 %v560, %v576
    %v579 = vmul.f32 %v577, %v577
    %v580 = vmul.f32 %v578, %v578
    %v581 = vsel %vm125, %v579, 0.0
    %582 = vadd.xlane.f32.xlu0 %v581
    %v583 = vpop.xlane.xlu0 %582
    %v584 = vsel %vm125, %v580, 0.0
    %585 = vadd.xlane.f32.xlu0 %v584
    %v586 = vpop.xlane.xlu0 %585
    %v587 = vmul.f32 %v583, %v574
    %v588 = vmul.f32 %v586, %v574
    %v589 = vadd.f32 %v587, 1e-05
    %v590 = vadd.f32 %v588, 1e-05
    %v591 = vrsqrt.pop %v589
    %v592 = vmul.f32 %v591, %v589
    %v593 = vmul.f32 %v592, %v591
    %v594 = vmul.f32 0.5, %v593
    %v595 = vsub.f32 1.5, %v594
    %v596 = vmul.f32 %v591, %v595
    %vm597 = vweird.f32 %v589
    %vm598 = vweird.f32 %v591
    %vm599 = vmor %vm597, %vm598
    %v600 = vsel %vm599, %v591, %v596
    %v601 = vrsqrt.pop %v590
    %v602 = vmul.f32 %v601, %v590
    %v603 = vmul.f32 %v602, %v601
    %v604 = vmul.f32 0.5, %v603
    %v605 = vsub.f32 1.5, %v604
    %v606 = vmul.f32 %v601, %v605
    %vm607 = vweird.f32 %v590
    %vm608 = vweird.f32 %v601
    %vm609 = vmor %vm607, %vm608
    %v610 = vsel %vm609, %v601, %v606
    %v611 = vmul.f32 %v577, %v600
    %v612 = vmul.f32 %v578, %v610
    %v613 = vperm.slane %v121, 0
    %v614 = vmul.f32 %v611, %v613
    %v615 = vmul.f32 %v612, %v613
    %v616 = vperm.slane %v122, 0
    %v617 = vadd.f32 %v614, %v616
    %v618 = vadd.f32 %v615, %v616
    %v619 = vperm.slane %v119, 0
    %v621 = vsel %vm125, %v617, 0
    %v624 = vsel %vm125, %v618, 0
    %626 = vmatpush.msra.mxu0 0.0
    %627 = vmatpush.msra.mxu0 0.0
    %628 = vmatpush.msra.mxu0 0.0
    %629 = vmatpush.msra.mxu0 0.0
    %630 = vmatpush.msra.mxu0 0.0
    %631 = vmatpush.msra.mxu0 0.0
    %632 = vmatpush.msra.mxu0 0.0
    %633 = vmatpush.msra.mxu0 0.0
    %634 = vmatpush.msra.mxu0 0.0
    %635 = vmatpush.msra.mxu0 0.0
    %636 = vmatpush.msra.mxu0 0.0
    %637 = vmatpush.msra.mxu0 0.0
    %638 = vmatpush.msra.mxu0 %v94
    %639 = vmatpush.msra.mxu0 %v93
    %640 = vmatpush.msra.mxu0 %v92
    %641 = vmatpush.msra.mxu0 %v91
    %642 = vmatmul.f32.gmra.mxu0 %v621
    %v643 = vpop.f32.mrf.mxu0
    %v644 = vadd.f32 %v619, %v643
    %645 = vmatmul.f32.gmra.mxu0 %v624
    %v646 = vpop.f32.mrf.mxu0
    %v647 = vadd.f32 %v619, %v646
    %648 = vdwg.mxu0
    %v649 = vmax.f32 %v644, 0.0
    %v650 = vmax.f32 %v647, 0.0
    %v651 = vperm.slane %v120, 0
    %v653 = vsel %vm371, %v649, 0
    %v656 = vsel %vm371, %v650, 0
    %658 = vmatpush.msra.mxu0 0.0
    %659 = vmatpush.msra.mxu0 0.0
    %660 = vmatpush.msra.mxu0 0.0
    %661 = vmatpush.msra.mxu0 0.0
    %662 = vmatpush.msra.mxu0 0.0
    %663 = vmatpush.msra.mxu0 0.0
    %664 = vmatpush.msra.mxu0 0.0
    %665 = vmatpush.msra.mxu0 0.0
    %666 = vmatpush.msra.mxu0 %v102
    %667 = vmatpush.msra.mxu0 %v101
    %668 = vmatpush.msra.mxu0 %v100
    %669 = vmatpush.msra.mxu0 %v99
    %670 = vmatpush.msra.mxu0 %v98
    %671 = vmatpush.msra.mxu0 %v97
    %672 = vmatpush.msra.mxu0 %v96
    %673 = vmatpush.msra.mxu0 %v95
    %674 = vmatmul.f32.gmra.mxu0 %v653
    %v675 = vpop.f32.mrf.mxu0
    %v676 = vadd.f32 %v651, %v675
    %677 = vmatmul.f32.gmra.mxu0 %v656
    %v678 = vpop.f32.mrf.mxu0
    %v679 = vadd.f32 %v651, %v678
    %680 = vdwg.mxu0
    %v681 = vadd.f32 %v676, %v617
    %v682 = vadd.f32 %v679, %v618
    %v683 = vsel %vm125, %v681, 0.0
    %684 = vadd.xlane.f32.xlu0 %v683
    %v685 = vpop.xlane.xlu0 %684
    %v686 = vsel %vm125, %v682, 0.0
    %687 = vadd.xlane.f32.xlu0 %v686
    %v688 = vpop.xlane.xlu0 %687
    %v689 = vmul.f32 %v685, %v574
    %v690 = vmul.f32 %v688, %v574
    %v691 = vsub.f32 %v681, %v689
    %v692 = vsub.f32 %v682, %v690
    %v693 = vmul.f32 %v691, %v691
    %v694 = vmul.f32 %v692, %v692
    %v695 = vsel %vm125, %v693, 0.0
    %696 = vadd.xlane.f32.xlu0 %v695
    %v697 = vpop.xlane.xlu0 %696
    %v698 = vsel %vm125, %v694, 0.0
    %699 = vadd.xlane.f32.xlu0 %v698
    %v700 = vpop.xlane.xlu0 %699
    %v701 = vmul.f32 %v697, %v574
    %v702 = vmul.f32 %v700, %v574
    %v703 = vadd.f32 %v701, 1e-05
    %v704 = vadd.f32 %v702, 1e-05
    %v705 = vrsqrt.pop %v703
    %v706 = vmul.f32 %v705, %v703
    %v707 = vmul.f32 %v706, %v705
    %v708 = vmul.f32 0.5, %v707
    %v709 = vsub.f32 1.5, %v708
    %v710 = vmul.f32 %v705, %v709
    %vm711 = vweird.f32 %v703
    %vm712 = vweird.f32 %v705
    %vm713 = vmor %vm711, %vm712
    %v714 = vsel %vm713, %v705, %v710
    %v715 = vrsqrt.pop %v704
    %v716 = vmul.f32 %v715, %v704
    %v717 = vmul.f32 %v716, %v715
    %v718 = vmul.f32 0.5, %v717
    %v719 = vsub.f32 1.5, %v718
    %v720 = vmul.f32 %v715, %v719
    %vm721 = vweird.f32 %v704
    %vm722 = vweird.f32 %v715
    %vm723 = vmor %vm721, %vm722
    %v724 = vsel %vm723, %v715, %v720
    %v725 = vmul.f32 %v691, %v714
    %v726 = vmul.f32 %v692, %v724
    %v727 = vperm.slane %v123, 0
    %v728 = vmul.f32 %v725, %v727
    %v729 = vmul.f32 %v726, %v727
    %v730 = vperm.slane %v124, 0
    %v731 = vadd.f32 %v728, %v730
    %v732 = vadd.f32 %v729, %v730
    %733 = vst.msk [vmem:[#allocation10] sm:$0xff] %vm125, %v731
    %734 = vst.msk [vmem:[#allocation10 + $0x8] sm:$0xff] %vm125, %v732
    // Predicated region
    $region34: #{tpu_custom_call.1} parent=1 // pred_check
      _
    $region35: #{tpu_custom_call.1} parent=1 // pred_check_branch
      %736 = sbr.rel (0) target = $region37
    $region36: #{tpu_custom_call.1} parent=1 // pred_region
      %738 = vsyncadd [#allocation4], 0
      %s739 = sshll.u32 [#allocation10], 4
      %s740 = int_to_ptr.vmem [resolvable:$true] %s739
      %s741 = sshll.u32 %s4, 4
      %s742 = int_to_ptr.hbm [resolvable:$true] %s741
      %747 = dma.vmem_to_hbm [thread:$0]  %s740, 256, %s742, [#allocation4], 128, 128, 8
    $region37: #{tpu_custom_call.1} parent=1 // pred_fallthru
      _
    // Predicated region
    $region38: #{tpu_custom_call.1} parent=1 // pred_check
      _
    $region39: #{tpu_custom_call.1} parent=1 // pred_check_branch
      %749 = sbr.rel (0) target = $region41
    $region40: #{tpu_custom_call.1} parent=1 // pred_region
      %751 = dma.done [#allocation4], 256
    $region41: #{tpu_custom_call.1} parent=1 // pred_fallthru
      _
    %752 = vsyncpa [#allocation3], 1
    %753 = vsyncpa [#allocation6], 1
    %754 = vsyncpa [#allocation9], 1
    %755 = vsyncpa [#allocation4], 1

</llo_original>
